<compile_context>
chip_gen: v6e
topology: v6e:2x2x1
jax: 0.10.0
libtpu: 0.0.40
codegen_flags: <defaults>
</compile_context>

<pallas_src>
import jax
import jax.numpy as jnp
from jax import lax
from jax.experimental import pallas as pl
from jax.experimental.pallas import tpu as pltpu

EPS = 1e-5
NHIDDEN = 128
KS = 3
PW = KS // 2


# --------------------------------------------------------------------------
# VMEM budgeting (generation-aware)
# --------------------------------------------------------------------------
def _vmem_limits():
    try:
        cap = int(pltpu.get_tpu_info().vmem_capacity_bytes)
    except Exception:
        cap = 64 * 1024 * 1024        # conservative fallback (fits v7x/v6e/v5e)
    limit = min(int(cap * 0.75), cap - (4 << 20))
    budget = int(limit * 0.70)        # headroom for compiler-internal scratch
    return limit, budget


def _fixed_bytes(C, L):
    b = 2 * KS * KS * L * NHIDDEN * 2           # w1 bf16 (double-buffered)
    b += 2 * 2 * KS * KS * NHIDDEN * C * 2      # w2,w3 bf16 (double-buffered)
    b += 1 << 20                                # biases, stats, accumulators, slack
    return b


def _tile_bytes(th, W, C, L, x_bytes):
    m2 = (th + 2) * W
    b = 2 * th * W * C * x_bytes                # x tile (double-buffered)
    b += 2 * th * W * C * x_bytes               # out tile (double-buffered)
    b += 2 * m2 * KS * KS * L * 2               # im2col patch tile bf16 (double-buffered)
    b += (th + 2) * (W + 2) * NHIDDEN * 2       # actv halo scratch bf16
    b += m2 * NHIDDEN * 4                       # f32 mlp_shared result before bf16 cast
    b += m2 * KS * KS * L * 2                   # patch value temp
    return b


def _select_tile_h(H, W, C, L, budget, x_bytes):
    """Pick pass-2 row tile TH and (possibly padded) Hp = k*TH."""
    fixed = _fixed_bytes(C, L)
    cands = sorted({min(H, t) for t in list(range(8, 1025, 8)) + [H]}, reverse=True)
    th_fit = cands[-1]
    for th in cands:
        if fixed + _tile_bytes(th, W, C, L, x_bytes) <= budget:
            th_fit = th
            break
    if H % th_fit == 0:
        return th_fit, H
    # prefer an exact divisor of H when it is not much smaller than the fit
    div = max(d for d in range(1, th_fit + 1) if H % d == 0)
    if div >= max(8, th_fit // 4):
        return div, H
    # otherwise pad H up to a multiple of a near-optimal TH and crop afterwards
    n_tiles = -(-H // th_fit)
    th = -(-H // n_tiles)
    th = -(-th // 8) * 8
    return th, n_tiles * th


def _select_stats_tile(Hp, W, C, budget, x_bytes):
    """Pass 1 is HBM-bandwidth bound: use the largest divisor tile that fits."""
    cap = max(budget * 3 // 4, 1)
    best = 1
    for th in range(1, Hp + 1):
        if Hp % th:
            continue
        if 2 * th * W * C * x_bytes <= cap:
            best = th
        else:
            break
    return best


def _select_row_chunk(TH, W, C):
    """Inner row-chunk for the gamma/beta accumulation (keeps acc small)."""
    target = max(1, (128 * 1024) // max(W * C * 8, 1))   # ~128 KiB of f32 accumulators
    target = max(target, -(-128 // max(W, 1)))           # keep matmul M >= ~128 if possible
    rc = max(1, min(TH, target))
    while TH % rc:
        rc -= 1
    return rc


# --------------------------------------------------------------------------
# Pass 1: per-sample InstanceNorm statistics (single sweep: sum & sum-of-squares)
# --------------------------------------------------------------------------
def _make_stats_kernel(inv_n):
    # TODO(synk): switch to a Welford/two-pass update if |mean| >> std at very
    # large H*W makes the single-pass f32 sum/sumsq variance drift.
    def kernel(x_ref, mean_ref, istd_ref):
        t = pl.program_id(1)
        _, TH1, W, C = x_ref.shape
        xs = x_ref[0].astype(jnp.float32).reshape(TH1 * W, C)

        @pl.when(t == 0)
        def _():
            mean_ref[...] = jnp.zeros_like(mean_ref)
            istd_ref[...] = jnp.zeros_like(istd_ref)

        mean_ref[0] = mean_ref[0] + jnp.sum(xs, axis=0, keepdims=True)
        istd_ref[0] = istd_ref[0] + jnp.sum(xs * xs, axis=0, keepdims=True)

        @pl.when(t == pl.num_programs(1) - 1)
        def _():
            m = mean_ref[0] * inv_n
            var = jnp.maximum(istd_ref[0] * inv_n - m * m, 0.0)   # biased variance
            mean_ref[0] = m
            istd_ref[0] = lax.rsqrt(var + EPS)

    return kernel


# --------------------------------------------------------------------------
# Pass 2: convs (wrapper im2col + per-chunk gamma/beta) and SPADE modulation
# --------------------------------------------------------------------------
def _make_spade_kernel(H, TH, W, C, L, RC):
    M2 = (TH + 2) * W
    nchunks = TH // RC

    def kernel(x_ref, patch_ref, mean_ref, istd_ref, w1_ref, b1_ref,
               w2_ref, b2_ref, w3_ref, b3_ref, out_ref, actv_ref):
        # x_ref:    (1, TH, W, C)                f32 activation row tile
        # patch_ref:(1, 1, (TH+2)*W, 9L) bf16    im2col'd segmap rows incl. 2-row halo
        # mean/istd:(1, 1, C) f32                per-sample instance-norm stats
        # w1_ref:   (9L, 128) bf16, b1_ref (1,128) f32
        # w2_ref/w3_ref: (3,3,128,C) bf16, b2/b3 (1,C) f32
        # actv_ref: VMEM (TH+2, W+2, 128) bf16   halo'd hidden activations
        t = pl.program_id(1)

        # ---- mlp_shared: ONE aligned (M2, 9L) x (9L, 128) matmul + bias + ReLU ----
        patch = patch_ref[0, 0]                                     # (M2, 9L) bf16
        pre = jnp.dot(patch, w1_ref[...], preferred_element_type=jnp.float32)
        actv = jnp.maximum(pre + b1_ref[...], 0.0).reshape(TH + 2, W, NHIDDEN)

        # Zero rows that correspond to the gamma/beta conv's zero padding
        # (global row -1 / H) or to H-padding rows; handles any tile position.
        row = lax.broadcasted_iota(jnp.int32, (TH + 2, 1, 1), 0)
        g = t * TH - 1 + row
        valid = jnp.logical_and(g >= 0, g < H)
        actv = jnp.where(valid, actv, 0.0).astype(actv_ref.dtype)

        # Stage halo'd activations in bf16 scratch; only the 1-col border is zeroed
        # (interior and halo rows are fully rewritten every grid step).
        # TODO(synk): dx=1,2 tap reads below are sublane-misaligned; if a bundle
        # dump shows vld/relayout binding, stage 3 column-shifted aligned copies.
        zcol = jnp.zeros((TH + 2, 1, NHIDDEN), actv_ref.dtype)
        actv_ref[:, pl.ds(0, 1), :] = zcol
        actv_ref[:, pl.ds(W + 1, 1), :] = zcol
        actv_ref[:, pl.ds(1, W), :] = actv

        mu = mean_ref[0]                                            # (1, C) f32
        isd = istd_ref[0]

        # ---- mlp_gamma / mlp_beta + modulation, chunked over rows ----
        # Separate gamma/beta accumulators (no mid-vreg lane split), bias folded
        # into the accumulator init, 9 taps innermost so each chunk's f32
        # accumulators stay small instead of 9x full-tile VMEM round trips.
        # TODO(synk): on v6e/v7x pair taps along K (K=256) once a bundle dump
        # confirms the MXU (not relayout) is binding.
        # TODO(synk): for norm_nc < 128 a lane-dense packed (W*C) output layout
        # would avoid masked partial stores / wasted lanes in this stage.
        @pl.loop(0, nchunks)
        def _(ci):
            r0 = pl.multiple_of(ci * RC, RC)
            acc_g = jnp.broadcast_to(b2_ref[...], (RC * W, C))
            acc_b = jnp.broadcast_to(b3_ref[...], (RC * W, C))
            for dy in range(KS):
                for dx in range(KS):
                    tap = actv_ref[pl.ds(r0 + dy, RC), pl.ds(dx, W), :]
                    tap = tap.reshape(RC * W, NHIDDEN)
                    acc_g = acc_g + jnp.dot(tap, w2_ref[dy, dx],
                                            preferred_element_type=jnp.float32)
                    acc_b = acc_b + jnp.dot(tap, w3_ref[dy, dx],
                                            preferred_element_type=jnp.float32)
            xs = x_ref[0, pl.ds(r0, RC), :, :].astype(jnp.float32).reshape(RC * W, C)
            out = (xs - mu) * isd * (1.0 + acc_g) + acc_b
            out_ref[0, pl.ds(r0, RC), :, :] = out.reshape(RC, W, C).astype(out_ref.dtype)

    return kernel


# --------------------------------------------------------------------------
# Wrapper / glue
# --------------------------------------------------------------------------
def _nearest_resize_nchw(seg, out_h, out_w):
    # Matches torch.nn.functional.interpolate(mode='nearest'): idx = floor(i*in/out)
    _, _, hs, ws = seg.shape
    rows = (jnp.arange(out_h) * hs // out_h).astype(jnp.int32)
    cols = (jnp.arange(out_w) * ws // out_w).astype(jnp.int32)
    return seg[:, :, rows[:, None], cols[None, :]]


def spade_forward(x_nchw, segmap_nchw, params):
    """x_nchw: (N, norm_nc, H, W); segmap_nchw: (N, label_nc, Hs, Ws).
    params = (w1, b1, w2, b2, w3, b3): conv weights in (kh, kw, cin, cout),
    biases shaped (cout,) or (1, cout)."""
    w1, b1, w2, b2, w3, b3 = params
    N, C, H, W = x_nchw.shape
    L = segmap_nchw.shape[1]
    x_bytes = jnp.dtype(x_nchw.dtype).itemsize

    vmem_limit, vmem_budget = _vmem_limits()
    TH, Hp = _select_tile_h(H, W, C, L, vmem_budget, x_bytes)
    T = Hp // TH
    RC = _select_row_chunk(TH, W, C)
    TH1 = _select_stats_tile(Hp, W, C, vmem_budget, x_bytes)
    T1 = Hp // TH1

    # ---- glue: nearest resize + NCHW -> NHWC (+ optional H padding, cropped later)
    # TODO(synk): keep the surrounding model NHWC end-to-end to drop these
    # transposes (each is a full HBM round trip done by XLA).
    seg_rs = _nearest_resize_nchw(segmap_nchw, H, W)                 # (N, L, H, W)
    x = jnp.transpose(x_nchw, (0, 2, 3, 1))                          # (N, H, W, C)
    if Hp > H:
        x = jnp.pad(x, ((0, 0), (0, Hp - H), (0, 0), (0, 0)))        # zeros: stats-safe

    # ---- wrapper-side im2col of the resized segmap, row-tiled with halos ----
    seg = jnp.transpose(seg_rs, (0, 2, 3, 1)).astype(jnp.bfloat16)   # (N, H, W, L)
    seg_sp = jnp.pad(seg, ((0, 0), (PW, PW), (PW, PW), (0, 0)))
    taps = [seg_sp[:, dy:dy + H, dx:dx + W, :]
            for dy in range(KS) for dx in range(KS)]                 # matches w1 flatten order
    patch = jnp.concatenate(taps, axis=-1)                           # (N, H, W, 9L)
    patch = jnp.pad(patch, ((0, 0), (1, Hp - H + 1), (0, 0), (0, 0)))  # halo + H-pad rows
    rows = jnp.arange(T)[:, None] * TH + jnp.arange(TH + 2)[None, :]   # (T, TH+2)
    patch_t = patch[:, rows]                                         # (N, T, TH+2, W, 9L)
    patch_t = patch_t.reshape(N, T, (TH + 2) * W, KS * KS * L)

    # bf16 MXU operands, f32 biases
    w1f = w1.reshape(KS * KS * L, NHIDDEN).astype(jnp.bfloat16)      # (9L, 128)
    b1f = b1.astype(jnp.float32).reshape(1, NHIDDEN)
    w2f = w2.astype(jnp.bfloat16)                                    # (3,3,128,C)
    b2f = b2.astype(jnp.float32).reshape(1, C)
    w3f = w3.astype(jnp.bfloat16)
    b3f = b3.astype(jnp.float32).reshape(1, C)

    # ---- pass 1: instance-norm statistics (own, larger row tile; zeros from
    # any H padding contribute nothing since we divide by the true H*W) ----
    mean, istd = pl.pallas_call(
        _make_stats_kernel(1.0 / float(H * W)),
        out_shape=(jax.ShapeDtypeStruct((N, 1, C), jnp.float32),
                   jax.ShapeDtypeStruct((N, 1, C), jnp.float32)),
        grid_spec=pltpu.PrefetchScalarGridSpec(
            num_scalar_prefetch=0,
            grid=(N, T1),
            in_specs=[pl.BlockSpec((1, TH1, W, C), lambda n, t: (n, t, 0, 0))],
            out_specs=[pl.BlockSpec((1, 1, C), lambda n, t: (n, 0, 0)),
                       pl.BlockSpec((1, 1, C), lambda n, t: (n, 0, 0))]),
        compiler_params=pltpu.CompilerParams(
            dimension_semantics=("parallel", "arbitrary"),
            vmem_limit_bytes=vmem_limit),
    )(x)

    # ---- pass 2: convs + modulation, row-tiled on (N, T) ----
    out_nhwc = pl.pallas_call(
        _make_spade_kernel(H, TH, W, C, L, RC),
        out_shape=jax.ShapeDtypeStruct((N, Hp, W, C), x.dtype),
        grid_spec=pltpu.PrefetchScalarGridSpec(
            num_scalar_prefetch=0,
            grid=(N, T),
            in_specs=[
                pl.BlockSpec((1, TH, W, C), lambda n, t: (n, t, 0, 0)),
                pl.BlockSpec((1, 1, (TH + 2) * W, KS * KS * L),
                             lambda n, t: (n, t, 0, 0)),
                pl.BlockSpec((1, 1, C), lambda n, t: (n, 0, 0)),
                pl.BlockSpec((1, 1, C), lambda n, t: (n, 0, 0)),
                pl.BlockSpec((KS * KS * L, NHIDDEN), lambda n, t: (0, 0)),
                pl.BlockSpec((1, NHIDDEN), lambda n, t: (0, 0)),
                pl.BlockSpec((KS, KS, NHIDDEN, C), lambda n, t: (0, 0, 0, 0)),
                pl.BlockSpec((1, C), lambda n, t: (0, 0)),
                pl.BlockSpec((KS, KS, NHIDDEN, C), lambda n, t: (0, 0, 0, 0)),
                pl.BlockSpec((1, C), lambda n, t: (0, 0)),
            ],
            out_specs=pl.BlockSpec((1, TH, W, C), lambda n, t: (n, t, 0, 0)),
            scratch_shapes=[
                pltpu.VMEM((TH + 2, W + 2 * PW, NHIDDEN), jnp.bfloat16)]),
        compiler_params=pltpu.CompilerParams(
            dimension_semantics=("parallel", "parallel"),
            vmem_limit_bytes=vmem_limit),
    )(x, patch_t, mean, istd, w1f, b1f, w2f, b2f, w3f, b3f)

    if Hp > H:
        out_nhwc = out_nhwc[:, :H]
    return jnp.transpose(out_nhwc, (0, 3, 1, 2))                     # back to NCHW


# ---------------- pure-JAX f32 reference (for correctness check) ----------------
def spade_reference(x_nchw, segmap_nchw, params_oihw):
    (w1o, b1, w2o, b2, w3o, b3) = params_oihw
    mean = jnp.mean(x_nchw, axis=(2, 3), keepdims=True)
    var = jnp.mean((x_nchw - mean) ** 2, axis=(2, 3), keepdims=True)
    normalized = (x_nchw - mean) / jnp.sqrt(var + EPS)

    seg = _nearest_resize_nchw(segmap_nchw, x_nchw.shape[2], x_nchw.shape[3])
    dn = ('NCHW', 'OIHW', 'NCHW')

    def conv(inp, w, b):
        y = lax.conv_general_dilated(inp, w, (1, 1), 'SAME',
                                     dimension_numbers=dn)
        return y + b.reshape(1, -1, 1, 1)

    actv = jnp.maximum(conv(seg, w1o, b1), 0.0)
    gamma = conv(actv, w2o, b2)
    beta = conv(actv, w3o, b3)
    return normalized * (1.0 + gamma) + beta


if __name__ == "__main__":
    norm_nc, label_nc = 4, 3
    N, H, W = 2, 16, 16
    Hs, Ws = 8, 8

    key = jax.random.PRNGKey(0)
    ks = jax.random.split(key, 8)
    x = jax.random.normal(ks[0], (N, norm_nc, H, W), jnp.float32)
    segmap = jax.random.normal(ks[1], (N, label_nc, Hs, Ws), jnp.float32)

    # deterministic parameter init (PyTorch conv weight layout OIHW, bias (cout,))
    w1_oihw = 0.1 * jax.random.normal(ks[2], (NHIDDEN, label_nc, KS, KS), jnp.float32)
    b1 = 0.1 * jax.random.normal(ks[3], (NHIDDEN,), jnp.float32)
    w2_oihw = 0.1 * jax.random.normal(ks[4], (norm_nc, NHIDDEN, KS, KS), jnp.float32)
    b2 = 0.1 * jax.random.normal(ks[5], (norm_nc,), jnp.float32)
    w3_oihw = 0.1 * jax.random.normal(ks[6], (norm_nc, NHIDDEN, KS, KS), jnp.float32)
    b3 = 0.1 * jax.random.normal(ks[7], (norm_nc,), jnp.float32)

    # kernel-side layout: weights (kh, kw, cin, cout), biases (1, cout)
    def to_hwio(w):
        return jnp.transpose(w, (2, 3, 1, 0))

    params_kernel = (to_hwio(w1_oihw), b1.reshape(1, -1),
                     to_hwio(w2_oihw), b2.reshape(1, -1),
                     to_hwio(w3_oihw), b3.reshape(1, -1))
    params_ref = (w1_oihw, b1, w2_oihw, b2, w3_oihw, b3)

    out = spade_forward(x, segmap, params_kernel)
    out = jax.block_until_ready(out)

    ref = spade_reference(x, segmap, params_ref)
    assert out.shape == (N, norm_nc, H, W)
    # Tolerance sized for bf16 MXU operands (conv weights/activations cast to
    # bf16, f32 accumulation) vs. the full-f32 reference.
    assert jnp.allclose(out, ref, rtol=5e-2, atol=1e-1), (
        float(jnp.max(jnp.abs(out - ref))))

    print("KERNEL_OK")
</pallas_src>

<mosaic_0001>
module attributes {stable_mosaic.version = 11 : i64} {
  func.func @kernel(%arg0: i32, %arg1: i32, %arg2: memref<1x16x16x4xf32, #tpu.memory_space<vmem>>, %arg3: memref<1x1x4xf32, #tpu.memory_space<vmem>>, %arg4: memref<1x1x4xf32, #tpu.memory_space<vmem>>) attributes {dimension_semantics = [#tpu.dimension_semantics<parallel>, #tpu.dimension_semantics<arbitrary>], iteration_bounds = array<i64: 2, 1>, scalar_prefetch = 0 : i64, scratch_operands = 0 : i64, tpu.core_type = #tpu.core_type<tc>, window_params = [{transform_indices = @transform_0, window_bounds = array<i64: 1, 16, 16, 4>}, {transform_indices = @transform_1, window_bounds = array<i64: 1, 1, 4>}, {transform_indices = @transform_2, window_bounds = array<i64: 1, 1, 4>}]} {
    %c0 = arith.constant 0 : index
    %c0_0 = arith.constant 0 : index
    %c0_1 = arith.constant 0 : index
    %c0_2 = arith.constant 0 : index
    %0 = vector.load %arg2[%c0, %c0_0, %c0_1, %c0_2] : memref<1x16x16x4xf32, #tpu.memory_space<vmem>>, vector<1x16x16x4xf32>
    %1 = vector.shape_cast %0 : vector<1x16x16x4xf32> to vector<16x16x4xf32>
    %2 = vector.shape_cast %1 : vector<16x16x4xf32> to vector<256x4xf32>
    %c0_i32 = arith.constant 0 : i32
    %3 = arith.cmpi eq, %arg1, %c0_i32 : i32
    %4 = arith.extui %3 : i1 to i32
    %c0_i32_3 = arith.constant 0 : i32
    %5 = arith.cmpi ne, %4, %c0_i32_3 : i32
    scf.if %5 {
      %cst_19 = arith.constant 0.000000e+00 : f32
      %26 = vector.broadcast %cst_19 : f32 to vector<1x1x4xf32>
      %c0_20 = arith.constant 0 : index
      %c0_21 = arith.constant 0 : index
      %c0_22 = arith.constant 0 : index
      %27 = vector.load %arg3[%c0_20, %c0_21, %c0_22] : memref<1x1x4xf32, #tpu.memory_space<vmem>>, vector<1x1x4xf32>
      tpu.vector_store %arg3[%c0_20, %c0_21, %c0_22], %26 {strides = array<i32>} : memref<1x1x4xf32, #tpu.memory_space<vmem>>, vector<1x1x4xf32>,
      %cst_23 = arith.constant 0.000000e+00 : f32
      %28 = vector.broadcast %cst_23 : f32 to vector<1x1x4xf32>
      %c0_24 = arith.constant 0 : index
      %c0_25 = arith.constant 0 : index
      %c0_26 = arith.constant 0 : index
      %29 = vector.load %arg4[%c0_24, %c0_25, %c0_26] : memref<1x1x4xf32, #tpu.memory_space<vmem>>, vector<1x1x4xf32>
      tpu.vector_store %arg4[%c0_24, %c0_25, %c0_26], %28 {strides = array<i32>} : memref<1x1x4xf32, #tpu.memory_space<vmem>>, vector<1x1x4xf32>,
    } else {
    }
    %c0_4 = arith.constant 0 : index
    %c0_5 = arith.constant 0 : index
    %c0_6 = arith.constant 0 : index
    %6 = vector.load %arg3[%c0_4, %c0_5, %c0_6] : memref<1x1x4xf32, #tpu.memory_space<vmem>>, vector<1x1x4xf32>
    %7 = vector.shape_cast %6 : vector<1x1x4xf32> to vector<1x4xf32>
    %cst = arith.constant dense<0.000000e+00> : vector<4xf32>
    %8 = vector.multi_reduction <add>, %2, %cst [0] : vector<256x4xf32> to vector<4xf32>
    %9 = vector.shape_cast %8 : vector<4xf32> to vector<1x4xf32>
    %10 = arith.addf %7, %9 : vector<1x4xf32>
    %c0_7 = arith.constant 0 : index
    %c0_8 = arith.constant 0 : index
    %c0_9 = arith.constant 0 : index
    %11 = vector.load %arg3[%c0_7, %c0_8, %c0_9] : memref<1x1x4xf32, #tpu.memory_space<vmem>>, vector<1x1x4xf32>
    %12 = vector.shape_cast %11 : vector<1x1x4xf32> to vector<1x4xf32>
    %13 = vector.shape_cast %10 : vector<1x4xf32> to vector<1x1x4xf32>
    tpu.vector_store %arg3[%c0_7, %c0_8, %c0_9], %13 {strides = array<i32>} : memref<1x1x4xf32, #tpu.memory_space<vmem>>, vector<1x1x4xf32>,
    %c0_10 = arith.constant 0 : index
    %c0_11 = arith.constant 0 : index
    %c0_12 = arith.constant 0 : index
    %14 = vector.load %arg4[%c0_10, %c0_11, %c0_12] : memref<1x1x4xf32, #tpu.memory_space<vmem>>, vector<1x1x4xf32>
    %15 = vector.shape_cast %14 : vector<1x1x4xf32> to vector<1x4xf32>
    %16 = arith.mulf %2, %2 : vector<256x4xf32>
    %cst_13 = arith.constant dense<0.000000e+00> : vector<4xf32>
    %17 = vector.multi_reduction <add>, %16, %cst_13 [0] : vector<256x4xf32> to vector<4xf32>
    %18 = vector.shape_cast %17 : vector<4xf32> to vector<1x4xf32>
    %19 = arith.addf %15, %18 : vector<1x4xf32>
    %c0_14 = arith.constant 0 : index
    %c0_15 = arith.constant 0 : index
    %c0_16 = arith.constant 0 : index
    %20 = vector.load %arg4[%c0_14, %c0_15, %c0_16] : memref<1x1x4xf32, #tpu.memory_space<vmem>>, vector<1x1x4xf32>
    %21 = vector.shape_cast %20 : vector<1x1x4xf32> to vector<1x4xf32>
    %22 = vector.shape_cast %19 : vector<1x4xf32> to vector<1x1x4xf32>
    tpu.vector_store %arg4[%c0_14, %c0_15, %c0_16], %22 {strides = array<i32>} : memref<1x1x4xf32, #tpu.memory_space<vmem>>, vector<1x1x4xf32>,
    %c0_i32_17 = arith.constant 0 : i32
    %23 = arith.cmpi eq, %arg1, %c0_i32_17 : i32
    %24 = arith.extui %23 : i1 to i32
    %c0_i32_18 = arith.constant 0 : i32
    %25 = arith.cmpi ne, %24, %c0_i32_18 : i32
    scf.if %25 {
      %c0_19 = arith.constant 0 : index
      %c0_20 = arith.constant 0 : index
      %c0_21 = arith.constant 0 : index
      %26 = vector.load %arg3[%c0_19, %c0_20, %c0_21] : memref<1x1x4xf32, #tpu.memory_space<vmem>>, vector<1x1x4xf32>
      %27 = vector.shape_cast %26 : vector<1x1x4xf32> to vector<1x4xf32>
      %cst_22 = arith.constant 3.906250e-03 : f32
      %28 = vector.broadcast %cst_22 : f32 to vector<1x4xf32>
      %29 = arith.mulf %27, %28 : vector<1x4xf32>
      %c0_23 = arith.constant 0 : index
      %c0_24 = arith.constant 0 : index
      %c0_25 = arith.constant 0 : index
      %30 = vector.load %arg4[%c0_23, %c0_24, %c0_25] : memref<1x1x4xf32, #tpu.memory_space<vmem>>, vector<1x1x4xf32>
      %31 = vector.shape_cast %30 : vector<1x1x4xf32> to vector<1x4xf32>
      %cst_26 = arith.constant 3.906250e-03 : f32
      %32 = vector.broadcast %cst_26 : f32 to vector<1x4xf32>
      %33 = arith.mulf %31, %32 : vector<1x4xf32>
      %34 = arith.mulf %29, %29 : vector<1x4xf32>
      %35 = arith.subf %33, %34 : vector<1x4xf32>
      %cst_27 = arith.constant 0.000000e+00 : f32
      %36 = vector.broadcast %cst_27 : f32 to vector<1x4xf32>
      %37 = arith.maximumf %35, %36 : vector<1x4xf32>
      %c0_28 = arith.constant 0 : index
      %c0_29 = arith.constant 0 : index
      %c0_30 = arith.constant 0 : index
      %38 = vector.load %arg3[%c0_28, %c0_29, %c0_30] : memref<1x1x4xf32, #tpu.memory_space<vmem>>, vector<1x1x4xf32>
      %39 = vector.shape_cast %38 : vector<1x1x4xf32> to vector<1x4xf32>
      %40 = vector.shape_cast %29 : vector<1x4xf32> to vector<1x1x4xf32>
      tpu.vector_store %arg3[%c0_28, %c0_29, %c0_30], %40 {strides = array<i32>} : memref<1x1x4xf32, #tpu.memory_space<vmem>>, vector<1x1x4xf32>,
      %cst_31 = arith.constant 9.99999974E-6 : f32
      %41 = vector.broadcast %cst_31 : f32 to vector<1x4xf32>
      %42 = arith.addf %37, %41 : vector<1x4xf32>
      %43 = math.rsqrt %42 : vector<1x4xf32>
      %c0_32 = arith.constant 0 : index
      %c0_33 = arith.constant 0 : index
      %c0_34 = arith.constant 0 : index
      %44 = vector.load %arg4[%c0_32, %c0_33, %c0_34] : memref<1x1x4xf32, #tpu.memory_space<vmem>>, vector<1x1x4xf32>
      %45 = vector.shape_cast %44 : vector<1x1x4xf32> to vector<1x4xf32>
      %46 = vector.shape_cast %43 : vector<1x4xf32> to vector<1x1x4xf32>
      tpu.vector_store %arg4[%c0_32, %c0_33, %c0_34], %46 {strides = array<i32>} : memref<1x1x4xf32, #tpu.memory_space<vmem>>, vector<1x1x4xf32>,
    } else {
    }
    return
  }
  func.func @transform_0(%arg0: i32, %arg1: i32) -> (i32, i32, i32, i32) {
    %c0_i32 = arith.constant 0 : i32
    %c0_i32_0 = arith.constant 0 : i32
    %c0_i32_1 = arith.constant 0 : i32
    return %arg0, %arg1, %c0_i32, %c0_i32_0 : i32, i32, i32, i32
  }
  func.func @transform_1(%arg0: i32, %arg1: i32) -> (i32, i32, i32) {
    %c0_i32 = arith.constant 0 : i32
    %c0_i32_0 = arith.constant 0 : i32
    %c0_i32_1 = arith.constant 0 : i32
    return %arg0, %c0_i32, %c0_i32_0 : i32, i32, i32
  }
  func.func @transform_2(%arg0: i32, %arg1: i32) -> (i32, i32, i32) {
    %c0_i32 = arith.constant 0 : i32
    %c0_i32_0 = arith.constant 0 : i32
    %c0_i32_1 = arith.constant 0 : i32
    return %arg0, %c0_i32, %c0_i32_0 : i32, i32, i32
  }
}

</mosaic_0001>

<llo_original>
// kernel: tpu_custom_call.1
$region0: #{tpu_custom_call.1}
  #allocation0 [shape = 'u32[]', space=smem, size = 0x4, offset = 0x4, fixed_abs, tag = 'smem constant byte address 0x4 - core index']
  #allocation1 [shape = 'u32[144,128]{1,0:T(1,128)}', space=vmem, size = 0x12000, scoped, tag = 'internal scratch']
  %s0 = inlined_call_operand.vmem [shape: f32[2,16,16,4], index: 0, kind: input, shape index: {}]
  %s1 = inlined_call_operand.hbm [shape: f32[2,1,4], index: 1, kind: output, shape index: {0}]
  %s2 = inlined_call_operand.hbm [shape: f32[2,1,4], index: 2, kind: output, shape index: {1}]
  %3 = xla_tuple %s1, %s2
  %s4 = sld [smem:[#allocation0]]
  $region53: #{tpu_custom_call.1} parent=0
    _
  %s6 = ssub.s32 1, %s4
  %s7 = scalar_select 0, %s6, %s4
  $region1: #{tpu_custom_call.1} parent=0
    #allocation2 [shape = 'u8[1024]{0}', space=vmem, size = 0x400, scoped, tag = 'output window, operand 0']
    #allocation3 [shape = 's32[2]{0}', space=sflag, size = 0x8, scoped, tag = 'scoped memory for tpu_custom_call.1']
    #allocation4 [shape = 'u8[1024]{0}', space=vmem, size = 0x400, scoped, tag = 'output window, operand 1']
    #allocation5 [shape = 's32[2]{0}', space=sflag, size = 0x8, scoped, tag = 'scoped memory for tpu_custom_call.1']
    %8 = vsyncpa [#allocation3], 0
    %s9 = scalar_lea.sflag [#allocation3], 1
    %10 = vsyncpa %s9, 0
    %11 = vsyncpa [#allocation5], 0
    %s12 = scalar_lea.sflag [#allocation5], 1
    %13 = vsyncpa %s12, 0
    loop: start=0, step=1, limit=4
    $region2: #{tpu_custom_call.1} parent=1 // loop_pre_header
      _
    $region3: #{tpu_custom_call.1} parent=1 // loop_header
      %s15 = sphi 0, %s19
      %p16 = scmp.ge.s32.totalorder %s15, 4
      %s22 = sphi 0, %s34
      %s23 = sphi 0, %s30
      %s24 = sphi 0, %s22
      %s25 = sphi 0, %s23
      %s26 = sphi 0, %s24
      %s27 = sphi 0, %s25
      %s39 = sphi 0, %s41
      %s42 = sphi 0, %s39
      %s43 = sphi 0, %s42
      %s59 = sphi 0, %s43
      %s65 = sphi 0, %s67
      %s68 = sphi 0, %s65
      %s69 = sphi 0, %s68
      %s85 = sphi 0, %s69
      %s91 = sphi 0, %s93
      %s94 = sphi 0, %s91
      %s95 = sphi 0, %s94
      %s111 = sphi 0, %s95
    $region4: #{tpu_custom_call.1} parent=1 // loop_header_branch
      %18 = sbr.rel (%p16) target = $region8
    $region5: #{tpu_custom_call.1} parent=1 // loop_body
      %s20 = ssub.s32 %s15, 1
      %s21 = ssub.s32 %s15, 2
      %s28 = sadd.s32 1, %s23
      %p29 = scmp.ge.s32.totalorder %s28, 1
      %s30 = scalar_select %p29, 0, %s28
      %s31 = sadd.s32 1, %s22
      %s32 = scalar_select %p29, %s31, %s22
      %p33 = scmp.ge.s32.totalorder %s32, 2
      %s34 = scalar_select %p33, 0, %s32
      %s35 = ssub.s32 %s22, %s34
      %s36 = ssub.s32 %s23, %s30
      %s37 = sor.u32 %s35, %s36
      %p38 = scmp.eq.s32.totalorder %s37, 0
      %s40 = sadd.s32 %s39, 1
      %s41 = scalar_select %p38, %s39, %s40
      %p44 = pneg %p38
      %p45 = scmp.eq.s32.totalorder %s15, 1
      %p46 = por %p44, %p45
      %p47 = scmp.ne.s32.totalorder %s39, %s42
      %p48 = scmp.eq.s32.totalorder %s15, 0
      %p49 = por %p47, %p48
      %p50 = scmp.ne.s32.totalorder %s39, %s42
      %p51 = scmp.eq.s32.totalorder %s20, 1
      %p52 = por %p50, %p51
      %p53 = scmp.ne.s32.totalorder %s42, %s43
      %p54 = scmp.eq.s32.totalorder %s20, 0
      %p55 = por %p53, %p54
      %p56 = scmp.ne.s32.totalorder %s42, %s43
      %p57 = scmp.eq.s32.totalorder %s21, 1
      %p58 = por %p56, %p57
      %p60 = scmp.ne.s32.totalorder %s43, %s59
      %p61 = scmp.eq.s32.totalorder %s21, 0
      %p62 = por %p60, %p61
      %s63 = ssub.s32 %s22, %s34
      %p64 = scmp.eq.s32.totalorder %s63, 0
      %s66 = sadd.s32 %s65, 1
      %s67 = scalar_select %p64, %s65, %s66
      %p70 = pneg %p64
      %p71 = scmp.eq.s32.totalorder %s15, 1
      %p72 = por %p70, %p71
      %p73 = scmp.ne.s32.totalorder %s65, %s68
      %p74 = scmp.eq.s32.totalorder %s15, 0
      %p75 = por %p73, %p74
      %p76 = scmp.ne.s32.totalorder %s65, %s68
      %p77 = scmp.eq.s32.totalorder %s20, 1
      %p78 = por %p76, %p77
      %p79 = scmp.ne.s32.totalorder %s68, %s69
      %p80 = scmp.eq.s32.totalorder %s20, 0
      %p81 = por %p79, %p80
      %p82 = scmp.ne.s32.totalorder %s68, %s69
      %p83 = scmp.eq.s32.totalorder %s21, 1
      %p84 = por %p82, %p83
      %p86 = scmp.ne.s32.totalorder %s69, %s85
      %p87 = scmp.eq.s32.totalorder %s21, 0
      %p88 = por %p86, %p87
      %s89 = ssub.s32 %s22, %s34
      %p90 = scmp.eq.s32.totalorder %s89, 0
      %s92 = sadd.s32 %s91, 1
      %s93 = scalar_select %p90, %s91, %s92
      %p96 = pneg %p90
      %p97 = scmp.eq.s32.totalorder %s15, 1
      %p98 = por %p96, %p97
      %p99 = scmp.ne.s32.totalorder %s91, %s94
      %p100 = scmp.eq.s32.totalorder %s15, 0
      %p101 = por %p99, %p100
      %p102 = scmp.ne.s32.totalorder %s91, %s94
      %p103 = scmp.eq.s32.totalorder %s20, 1
      %p104 = por %p102, %p103
      %p105 = scmp.ne.s32.totalorder %s94, %s95
      %p106 = scmp.eq.s32.totalorder %s20, 0
      %p107 = por %p105, %p106
      %p108 = scmp.ne.s32.totalorder %s94, %s95
      %p109 = scmp.eq.s32.totalorder %s21, 1
      %p110 = por %p108, %p109
      %p112 = scmp.ne.s32.totalorder %s95, %s111
      %p113 = scmp.eq.s32.totalorder %s21, 0
      %p114 = por %p112, %p113
      %p115 = scmp.le.s32.totalorder 1, %s15
      %p116 = scmp.lt.s32.totalorder %s15, 3
      %p117 = pnand %p115, %p116
      %p118 = pneg %p117
      // Predicated region
      $region9: #{tpu_custom_call.1} parent=5 // pred_check
        _
      $region10: #{tpu_custom_call.1} parent=5 // pred_check_branch
        %120 = sbr.rel (%p117) target = $region12
      $region11: #{tpu_custom_call.1} parent=5 // pred_region
        %s121 = ssub.s32 %s15, 1
      $region12: #{tpu_custom_call.1} parent=5 // pred_fallthru
        _
      %p122 = scmp.lt.s32.totalorder %s15, 2
      // Predicated region
      $region13: #{tpu_custom_call.1} parent=5 // pred_check
        %p123 = pneg %p122
      $region14: #{tpu_custom_call.1} parent=5 // pred_check_branch
        %125 = sbr.rel (%p123) target = $region16
      $region15: #{tpu_custom_call.1} parent=5 // pred_region
        // Predicated region
        $region17: #{tpu_custom_call.1} parent=15 // pred_check
          %p126 = pneg %p49
        $region18: #{tpu_custom_call.1} parent=15 // pred_check_branch
          %128 = sbr.rel (%p126) target = $region20
        $region19: #{tpu_custom_call.1} parent=15 // pred_region
          %s129 = smul.u32 16, %s23
          %p130 = scmp.lt.s32.totalorder %s22, 1
          %s131 = scalar_select %p130, %s22, 1
          %p132 = scmp.lt.s32.totalorder %s129, 15
          %s133 = scalar_select %p132, %s129, 15
          %s134 = smul.addr %s133, 2
          %s135 = smul.addr %s131, 32
          %s136 = sadd.s32 %s134, %s135
          %s137 = smul.addr %s136, 8
          %s138 = scalar_lea.vmem %s0, %s137
          %s139 = smul.u32 16, %s23
        $region20: #{tpu_custom_call.1} parent=15 // pred_fallthru
          _
      $region16: #{tpu_custom_call.1} parent=5 // pred_fallthru
        _
      %p140 = scmp.le.s32.totalorder 1, %s15
      %p141 = scmp.lt.s32.totalorder %s15, 3
      %p142 = pnand %p140, %p141
      %p143 = pneg %p142
      // Predicated region
      $region21: #{tpu_custom_call.1} parent=5 // pred_check
        _
      $region22: #{tpu_custom_call.1} parent=5 // pred_check_branch
        %145 = sbr.rel (%p142) target = $region24
      $region23: #{tpu_custom_call.1} parent=5 // pred_region
        %s146 = ssub.s32 %s15, 1
        %s147 = smul.u32 16, %s25
        %p148 = scmp.lt.s32.totalorder %s24, 1
        %s149 = scalar_select %p148, %s24, 1
        %p150 = scmp.lt.s32.totalorder %s147, 15
        %s151 = scalar_select %p150, %s147, 15
        %s152 = smul.addr %s151, 2
        %s153 = smul.addr %s149, 32
        %s154 = sadd.s32 %s152, %s153
        %s155 = smul.addr %s154, 8
        %s156 = scalar_lea.vmem %s0, %s155
        %p157 = pneg %p55
        %p158 = pneg %p52
        %p159 = pneg %p81
        %p160 = pneg %p78
        %s161 = sand.u32 %s68, 1
        %s162 = scalar_lea.sflag [#allocation3], %s161
        %s163 = sand.u32 %s68, 1
        %s164 = scalar_lea.vmem [#allocation2], %s163
        %p165 = pneg %p107
        %p166 = pneg %p104
        %s167 = sand.u32 %s94, 1
        %s168 = scalar_lea.sflag [#allocation5], %s167
        %s169 = sand.u32 %s94, 1
        %s170 = scalar_lea.vmem [#allocation4], %s169
        %s171 = smul.u32 16, %s25
        %p172 = scmp.lt.s32.totalorder %s24, 1
        %s173 = scalar_select %p172, %s24, 1
        %p174 = scmp.lt.s32.totalorder %s171, 15
        %s175 = scalar_select %p174, %s171, 15
        %s176 = smul.addr %s175, 2
        %s177 = smul.addr %s173, 32
        %s178 = sadd.s32 %s176, %s177
        %s179 = smul.addr %s178, 8
        %s180 = scalar_lea.vmem %s0, %s179
        %s181 = smul.u32 16, %s25
        %v182 = vld [vmem:[%s180] sm:$0xff]
        %v183 = vld [vmem:[%s180 + $0x8] sm:$0xff]
        %v184 = vld [vmem:[%s180 + $0x10] sm:$0xff]
        %v185 = vld [vmem:[%s180 + $0x18] sm:$0xff]
        %v186 = vld [vmem:[%s180 + $0x20] sm:$0xff]
        %v187 = vld [vmem:[%s180 + $0x28] sm:$0xff]
        %v188 = vld [vmem:[%s180 + $0x30] sm:$0xff]
        %v189 = vld [vmem:[%s180 + $0x38] sm:$0xff]
        %v190 = vld [vmem:[%s180 + $0x40] sm:$0xff]
        %v191 = vld [vmem:[%s180 + $0x48] sm:$0xff]
        %v192 = vld [vmem:[%s180 + $0x50] sm:$0xff]
        %v193 = vld [vmem:[%s180 + $0x58] sm:$0xff]
        %v194 = vld [vmem:[%s180 + $0x60] sm:$0xff]
        %v195 = vld [vmem:[%s180 + $0x68] sm:$0xff]
        %v196 = vld [vmem:[%s180 + $0x70] sm:$0xff]
        %v197 = vld [vmem:[%s180 + $0x78] sm:$0xff]
        %v198 = vld [vmem:[%s180 + $0x80] sm:$0xff]
        %v199 = vld [vmem:[%s180 + $0x88] sm:$0xff]
        %v200 = vld [vmem:[%s180 + $0x90] sm:$0xff]
        %v201 = vld [vmem:[%s180 + $0x98] sm:$0xff]
        %v202 = vld [vmem:[%s180 + $0xa0] sm:$0xff]
        %v203 = vld [vmem:[%s180 + $0xa8] sm:$0xff]
        %v204 = vld [vmem:[%s180 + $0xb0] sm:$0xff]
        %v205 = vld [vmem:[%s180 + $0xb8] sm:$0xff]
        %v206 = vld [vmem:[%s180 + $0xc0] sm:$0xff]
        %v207 = vld [vmem:[%s180 + $0xc8] sm:$0xff]
        %v208 = vld [vmem:[%s180 + $0xd0] sm:$0xff]
        %v209 = vld [vmem:[%s180 + $0xd8] sm:$0xff]
        %v210 = vld [vmem:[%s180 + $0xe0] sm:$0xff]
        %v211 = vld [vmem:[%s180 + $0xe8] sm:$0xff]
        %v212 = vld [vmem:[%s180 + $0xf0] sm:$0xff]
        %v213 = vld [vmem:[%s180 + $0xf8] sm:$0xff]
        %p214 = scmp.eq.s32.totalorder %s25, 0
        // Predicated region
        $region25: #{tpu_custom_call.1} parent=23 // pred_check
          %p215 = pneg %p214
        $region26: #{tpu_custom_call.1} parent=23 // pred_check_branch
          %217 = sbr.rel (%p215) target = $region28
        $region27: #{tpu_custom_call.1} parent=23 // pred_region
          %vm218 = vcmask 24576
          %219 = vst.msk [vmem:[%s164] sm:$0x1] %vm218, 0.0
          %220 = vst.msk [vmem:[%s170] sm:$0x1] %vm218, 0.0
        $region28: #{tpu_custom_call.1} parent=23 // pred_fallthru
          _
        %v221 = vld [vmem:[%s164] sm:$0x1]
        %vm222 = vcmask 31744
        %v223 = vsel %vm222, %v182, 0.0
        %v224 = vsel %vm222, %v183, 0.0
        %v225 = vadd.f32 %v223, %v224
        %v226 = vsel %vm222, %v184, 0.0
        %v227 = vadd.f32 %v225, %v226
        %v228 = vsel %vm222, %v185, 0.0
        %v229 = vadd.f32 %v227, %v228
        %v230 = vsel %vm222, %v186, 0.0
        %v231 = vadd.f32 %v229, %v230
        %v232 = vsel %vm222, %v187, 0.0
        %v233 = vadd.f32 %v231, %v232
        %v234 = vsel %vm222, %v188, 0.0
        %v235 = vadd.f32 %v233, %v234
        %v236 = vsel %vm222, %v189, 0.0
        %v237 = vadd.f32 %v235, %v236
        %v238 = vsel %vm222, %v190, 0.0
        %v239 = vadd.f32 %v237, %v238
        %v240 = vsel %vm222, %v191, 0.0
        %v241 = vadd.f32 %v239, %v240
        %v242 = vsel %vm222, %v192, 0.0
        %v243 = vadd.f32 %v241, %v242
        %v244 = vsel %vm222, %v193, 0.0
        %v245 = vadd.f32 %v243, %v244
        %v246 = vsel %vm222, %v194, 0.0
        %v247 = vadd.f32 %v245, %v246
        %v248 = vsel %vm222, %v195, 0.0
        %v249 = vadd.f32 %v247, %v248
        %v250 = vsel %vm222, %v196, 0.0
        %v251 = vadd.f32 %v249, %v250
        %v252 = vsel %vm222, %v197, 0.0
        %v253 = vadd.f32 %v251, %v252
        %v254 = vsel %vm222, %v198, 0.0
        %v255 = vadd.f32 %v253, %v254
        %v256 = vsel %vm222, %v199, 0.0
        %v257 = vadd.f32 %v255, %v256
        %v258 = vsel %vm222, %v200, 0.0
        %v259 = vadd.f32 %v257, %v258
        %v260 = vsel %vm222, %v201, 0.0
        %v261 = vadd.f32 %v259, %v260
        %v262 = vsel %vm222, %v202, 0.0
        %v263 = vadd.f32 %v261, %v262
        %v264 = vsel %vm222, %v203, 0.0
        %v265 = vadd.f32 %v263, %v264
        %v266 = vsel %vm222, %v204, 0.0
        %v267 = vadd.f32 %v265, %v266
        %v268 = vsel %vm222, %v205, 0.0
        %v269 = vadd.f32 %v267, %v268
        %v270 = vsel %vm222, %v206, 0.0
        %v271 = vadd.f32 %v269, %v270
        %v272 = vsel %vm222, %v207, 0.0
        %v273 = vadd.f32 %v271, %v272
        %v274 = vsel %vm222, %v208, 0.0
        %v275 = vadd.f32 %v273, %v274
        %v276 = vsel %vm222, %v209, 0.0
        %v277 = vadd.f32 %v275, %v276
        %v278 = vsel %vm222, %v210, 0.0
        %v279 = vadd.f32 %v277, %v278
        %v280 = vsel %vm222, %v211, 0.0
        %v281 = vadd.f32 %v279, %v280
        %v282 = vsel %vm222, %v212, 0.0
        %v283 = vadd.f32 %v281, %v282
        %v284 = vsel %vm222, %v213, 0.0
        %v285 = vadd.f32 %v283, %v284
        %v286 = vrot.slane %v285, 4
        %v287 = vadd.f32 %v285, %v286
        %v288 = vrot.slane %v287, 2
        %v289 = vadd.f32 %v287, %v288
        %v290 = vrot.slane %v289, 1
        %v291 = vadd.f32 %v289, %v290
        %v292 = vadd.f32 %v221, %v291
        %vm293 = vcmask 24576
        %294 = vst.msk [vmem:[%s164] sm:$0x1] %vm293, %v292
        %v295 = vld [vmem:[%s170] sm:$0x1]
        %v296 = vmul.f32 %v182, %v182
        %v297 = vmul.f32 %v183, %v183
        %v298 = vmul.f32 %v184, %v184
        %v299 = vmul.f32 %v185, %v185
        %v300 = vmul.f32 %v186, %v186
        %v301 = vmul.f32 %v187, %v187
        %v302 = vmul.f32 %v188, %v188
        %v303 = vmul.f32 %v189, %v189
        %v304 = vmul.f32 %v190, %v190
        %v305 = vmul.f32 %v191, %v191
        %v306 = vmul.f32 %v192, %v192
        %v307 = vmul.f32 %v193, %v193
        %v308 = vmul.f32 %v194, %v194
        %v309 = vmul.f32 %v195, %v195
        %v310 = vmul.f32 %v196, %v196
        %v311 = vmul.f32 %v197, %v197
        %v312 = vmul.f32 %v198, %v198
        %v313 = vmul.f32 %v199, %v199
        %v314 = vmul.f32 %v200, %v200
        %v315 = vmul.f32 %v201, %v201
        %v316 = vmul.f32 %v202, %v202
        %v317 = vmul.f32 %v203, %v203
        %v318 = vmul.f32 %v204, %v204
        %v319 = vmul.f32 %v205, %v205
        %v320 = vmul.f32 %v206, %v206
        %v321 = vmul.f32 %v207, %v207
        %v322 = vmul.f32 %v208, %v208
        %v323 = vmul.f32 %v209, %v209
        %v324 = vmul.f32 %v210, %v210
        %v325 = vmul.f32 %v211, %v211
        %v326 = vmul.f32 %v212, %v212
        %v327 = vmul.f32 %v213, %v213
        %v328 = vsel %vm222, %v296, 0.0
        %v329 = vsel %vm222, %v297, 0.0
        %v330 = vadd.f32 %v328, %v329
        %v331 = vsel %vm222, %v298, 0.0
        %v332 = vadd.f32 %v330, %v331
        %v333 = vsel %vm222, %v299, 0.0
        %v334 = vadd.f32 %v332, %v333
        %v335 = vsel %vm222, %v300, 0.0
        %v336 = vadd.f32 %v334, %v335
        %v337 = vsel %vm222, %v301, 0.0
        %v338 = vadd.f32 %v336, %v337
        %v339 = vsel %vm222, %v302, 0.0
        %v340 = vadd.f32 %v338, %v339
        %v341 = vsel %vm222, %v303, 0.0
        %v342 = vadd.f32 %v340, %v341
        %v343 = vsel %vm222, %v304, 0.0
        %v344 = vadd.f32 %v342, %v343
        %v345 = vsel %vm222, %v305, 0.0
        %v346 = vadd.f32 %v344, %v345
        %v347 = vsel %vm222, %v306, 0.0
        %v348 = vadd.f32 %v346, %v347
        %v349 = vsel %vm222, %v307, 0.0
        %v350 = vadd.f32 %v348, %v349
        %v351 = vsel %vm222, %v308, 0.0
        %v352 = vadd.f32 %v350, %v351
        %v353 = vsel %vm222, %v309, 0.0
        %v354 = vadd.f32 %v352, %v353
        %v355 = vsel %vm222, %v310, 0.0
        %v356 = vadd.f32 %v354, %v355
        %v357 = vsel %vm222, %v311, 0.0
        %v358 = vadd.f32 %v356, %v357
        %v359 = vsel %vm222, %v312, 0.0
        %v360 = vadd.f32 %v358, %v359
        %v361 = vsel %vm222, %v313, 0.0
        %v362 = vadd.f32 %v360, %v361
        %v363 = vsel %vm222, %v314, 0.0
        %v364 = vadd.f32 %v362, %v363
        %v365 = vsel %vm222, %v315, 0.0
        %v366 = vadd.f32 %v364, %v365
        %v367 = vsel %vm222, %v316, 0.0
        %v368 = vadd.f32 %v366, %v367
        %v369 = vsel %vm222, %v317, 0.0
        %v370 = vadd.f32 %v368, %v369
        %v371 = vsel %vm222, %v318, 0.0
        %v372 = vadd.f32 %v370, %v371
        %v373 = vsel %vm222, %v319, 0.0
        %v374 = vadd.f32 %v372, %v373
        %v375 = vsel %vm222, %v320, 0.0
        %v376 = vadd.f32 %v374, %v375
        %v377 = vsel %vm222, %v321, 0.0
        %v378 = vadd.f32 %v376, %v377
        %v379 = vsel %vm222, %v322, 0.0
        %v380 = vadd.f32 %v378, %v379
        %v381 = vsel %vm222, %v323, 0.0
        %v382 = vadd.f32 %v380, %v381
        %v383 = vsel %vm222, %v324, 0.0
        %v384 = vadd.f32 %v382, %v383
        %v385 = vsel %vm222, %v325, 0.0
        %v386 = vadd.f32 %v384, %v385
        %v387 = vsel %vm222, %v326, 0.0
        %v388 = vadd.f32 %v386, %v387
        %v389 = vsel %vm222, %v327, 0.0
        %v390 = vadd.f32 %v388, %v389
        %v391 = vrot.slane %v390, 4
        %v392 = vadd.f32 %v390, %v391
        %v393 = vrot.slane %v392, 2
        %v394 = vadd.f32 %v392, %v393
        %v395 = vrot.slane %v394, 1
        %v396 = vadd.f32 %v394, %v395
        %v397 = vadd.f32 %v295, %v396
        %398 = vst.msk [vmem:[%s170] sm:$0x1] %vm293, %v397
        // Predicated region
        $region29: #{tpu_custom_call.1} parent=23 // pred_check
          %p399 = pneg %p214
        $region30: #{tpu_custom_call.1} parent=23 // pred_check_branch
          %401 = sbr.rel (%p399) target = $region32
        $region31: #{tpu_custom_call.1} parent=23 // pred_region
          %v402 = vld [vmem:[%s164] sm:$0x1]
          %v403 = vmul.f32 %v402, 0.00390625
          %v404 = vld [vmem:[%s170] sm:$0x1]
          %v405 = vmul.f32 %v404, 0.00390625
          %v406 = vmul.f32 %v403, %v403
          %v407 = vsub.f32 %v405, %v406
          %v408 = vmax.f32 %v407, 0.0
          %409 = vst.msk [vmem:[%s164] sm:$0x1] %vm293, %v403
          %v410 = vadd.f32 %v408, 1e-05
          %v411 = vrsqrt.pop %v410
          %412 = vst.msk [vmem:[%s170] sm:$0x1] %vm293, %v411
        $region32: #{tpu_custom_call.1} parent=23 // pred_fallthru
          _
        %s413 = sand.u32 %s68, 1
        %s414 = scalar_lea.sflag [#allocation3], %s413
        %s415 = sand.u32 %s68, 1
        %s416 = scalar_lea.vmem [#allocation2], %s415
        %s417 = sand.u32 %s94, 1
        %s418 = scalar_lea.sflag [#allocation5], %s417
        %s419 = sand.u32 %s94, 1
        %s420 = scalar_lea.vmem [#allocation4], %s419
        // Predicated region
        $region33: #{tpu_custom_call.1} parent=23 // pred_check
          %p421 = pneg %p78
        $region34: #{tpu_custom_call.1} parent=23 // pred_check_branch
          %423 = sbr.rel (%p421) target = $region36
        $region35: #{tpu_custom_call.1} parent=23 // pred_region
          %s425 = ssub.s32 16, 16
          %426 = vsyncadd %s414, %s425
          %s427 = smul.addr %s24, 16
          %s428 = scalar_lea.hbm %s1, %s427
          %s430 = sshll.u32 %s416, 4
          %s431 = int_to_ptr.vmem [resolvable:$true] %s430
          %433 = dma.vmem_to_hbm [thread:$0]  %s431, 16, %s428, %s414
        $region36: #{tpu_custom_call.1} parent=23 // pred_fallthru
          _
        // Predicated region
        $region37: #{tpu_custom_call.1} parent=23 // pred_check
          %p434 = pneg %p104
        $region38: #{tpu_custom_call.1} parent=23 // pred_check_branch
          %436 = sbr.rel (%p434) target = $region40
        $region39: #{tpu_custom_call.1} parent=23 // pred_region
          %s438 = ssub.s32 16, 16
          %439 = vsyncadd %s418, %s438
          %s440 = smul.addr %s24, 16
          %s441 = scalar_lea.hbm %s2, %s440
          %s443 = sshll.u32 %s420, 4
          %s444 = int_to_ptr.vmem [resolvable:$true] %s443
          %446 = dma.vmem_to_hbm [thread:$0]  %s444, 16, %s441, %s418
        $region40: #{tpu_custom_call.1} parent=23 // pred_fallthru
          _
      $region24: #{tpu_custom_call.1} parent=5 // pred_fallthru
        _
      %p447 = scmp.le.s32.totalorder 2, %s15
      // Predicated region
      $region41: #{tpu_custom_call.1} parent=5 // pred_check
        %p448 = pneg %p447
      $region42: #{tpu_custom_call.1} parent=5 // pred_check_branch
        %450 = sbr.rel (%p448) target = $region44
      $region43: #{tpu_custom_call.1} parent=5 // pred_region
        %s451 = ssub.s32 %s15, 2
        // Predicated region
        $region45: #{tpu_custom_call.1} parent=43 // pred_check
          %p452 = pneg %p84
        $region46: #{tpu_custom_call.1} parent=43 // pred_check_branch
          %454 = sbr.rel (%p452) target = $region48
        $region47: #{tpu_custom_call.1} parent=43 // pred_region
          %s455 = sand.u32 %s69, 1
          %s456 = scalar_lea.sflag [#allocation3], %s455
          %s457 = sand.u32 %s69, 1
          %s458 = scalar_lea.vmem [#allocation2], %s457
          %459 = dma.done %s456, 16
        $region48: #{tpu_custom_call.1} parent=43 // pred_fallthru
          _
        // Predicated region
        $region49: #{tpu_custom_call.1} parent=43 // pred_check
          %p460 = pneg %p110
        $region50: #{tpu_custom_call.1} parent=43 // pred_check_branch
          %462 = sbr.rel (%p460) target = $region52
        $region51: #{tpu_custom_call.1} parent=43 // pred_region
          %s463 = sand.u32 %s95, 1
          %s464 = scalar_lea.sflag [#allocation5], %s463
          %s465 = sand.u32 %s95, 1
          %s466 = scalar_lea.vmem [#allocation4], %s465
          %467 = dma.done %s464, 16
        $region52: #{tpu_custom_call.1} parent=43 // pred_fallthru
          _
      $region44: #{tpu_custom_call.1} parent=5 // pred_fallthru
        _
    $region6: #{tpu_custom_call.1} parent=1 // loop_footer
      %s19 = sadd.s32 1, %s15
    $region7: #{tpu_custom_call.1} parent=1 // loop_footer_branch
      %14 = sbr.rel target = $region3
    $region8: #{tpu_custom_call.1} parent=1 // loop_exit
      _
    %468 = vsyncpa [#allocation3], 1
    %s469 = scalar_lea.sflag [#allocation3], 1
    %470 = vsyncpa %s469, 1
    %471 = vsyncpa [#allocation5], 1
    %s472 = scalar_lea.sflag [#allocation5], 1
    %473 = vsyncpa %s472, 1

</llo_original>
